<compile_context>
chip_gen: v7x
topology: tpu7x:2x2x1
jax: 0.10.0
libtpu: 0.0.40
codegen_flags: <defaults>
</compile_context>

<pallas_src>
import functools

import jax
import jax.numpy as jnp
from jax.experimental import pallas as pl
from jax.experimental.pallas import tpu as pltpu


def _a2c_ca_kernel(x_ref, wb_ref, bb_ref, wh_ref, bh_ref, out_ref, *, action_size):
    x = x_ref[...]

    # Shared base: (tb, D) @ (D, H) + b -> ReLU   (f32 accumulation on MXU)
    h = jnp.dot(x, wb_ref[...], preferred_element_type=jnp.float32) + bb_ref[...]
    h = jnp.maximum(h, 0.0)
    h = h.astype(wh_ref.dtype)  # match head-weight dtype for the MXU (no-op for f32)

    # Fused heads: one (tb, H) @ (H, 2A+1) matmul + one bias broadcast.
    z = jnp.dot(h, wh_ref[...], preferred_element_type=jnp.float32) + bh_ref[...]

    # Per-lane activation select: [0, A) tanh, [A, 2A) softplus, [2A, 2A+1) identity.
    lane = jax.lax.broadcasted_iota(jnp.int32, z.shape, dimension=1)
    tanh_z = jnp.tanh(z)                                           # EUP
    sp_z = jnp.maximum(z, 0.0) + jnp.log1p(jnp.exp(-jnp.abs(z)))   # stable softplus
    out = jnp.where(lane < action_size, tanh_z,
                    jnp.where(lane < 2 * action_size, sp_z, z))
    out_ref[...] = out.astype(out_ref.dtype)


def _round_up(n, m):
    return ((n + m - 1) // m) * m


@functools.partial(jax.jit, static_argnames=("block_batch", "compute_dtype"))
def a2c_net_ca_forward(x, wb, bb, wmu, bmu, wvar, bvar, wv, bv,
                       *, block_batch=8192, compute_dtype=jnp.float32):
    """x: (B, input_size) f32 -> (mu (B, A), var (B, A), value (B, 1)), all f32."""
    B, D = x.shape
    H = wb.shape[1]
    A = wmu.shape[1]
    NO = 2 * A + 1  # fused head output width: [mu | var | value]

    # Fuse head weights/biases into a single (H, 2A+1) matmul.
    wh = jnp.concatenate([wmu, wvar, wv], axis=1)
    bh = jnp.concatenate([bmu, bvar, bv], axis=1)

    # Optional half-width HBM reads: cast matmul operands *before* the DMA.
    # Keep f32 on v5e (no bf16 VPU/EUP) and for exact parity tests.
    if compute_dtype != jnp.float32:
        x = x.astype(compute_dtype)
        wb = wb.astype(compute_dtype)
        wh = wh.astype(compute_dtype)

    kernel = functools.partial(_a2c_ca_kernel, action_size=A)

    cost = pl.CostEstimate(
        flops=2 * B * (D * H + H * NO),
        transcendentals=2 * B * NO,                       # tanh + exp over fused block
        bytes_accessed=(B * D + B * NO + D * H + H * NO + H + NO) * 4,
    )

    min_rows = 8  # sublane granularity
    if B < 2 * min_rows:
        # Tiny batch: whole problem in one VMEM block, no grid/pipelining machinery.
        vmem = pltpu.MemorySpace.VMEM
        fused = pl.pallas_call(
            kernel,
            out_shape=jax.ShapeDtypeStruct((B, NO), jnp.float32),
            in_specs=[pl.BlockSpec(memory_space=vmem)] * 5,
            out_specs=pl.BlockSpec(memory_space=vmem),
            cost_estimate=cost,
        )(x, wb, bb, wh, bh)
    else:
        # Batch-tiled grid: weights/biases resident in VMEM (index_map -> (0,0)),
        # >= 2 (even) batch tiles so v7x can shard them over both TensorCores.
        block_batch = max(_round_up(block_batch, min_rows), min_rows)
        num_tiles = max(2, pl.cdiv(B, block_batch))
        num_tiles += num_tiles % 2                        # even tile count
        tb = _round_up(pl.cdiv(B, num_tiles), min_rows)   # balanced tile size
        b_pad = num_tiles * tb                            # pads < ~8*num_tiles rows
        if b_pad != B:
            x = jnp.pad(x, ((0, b_pad - B), (0, 0)))

        resident = lambda i: (0, 0)   # same block every step => no re-DMA
        tiles = lambda i: (i, 0)      # x / output: tile over batch

        fused = pl.pallas_call(
            kernel,
            out_shape=jax.ShapeDtypeStruct((b_pad, NO), jnp.float32),
            grid=(num_tiles,),
            in_specs=[
                pl.BlockSpec((tb, D), tiles),
                pl.BlockSpec((D, H), resident),
                pl.BlockSpec((1, H), resident),
                pl.BlockSpec((H, NO), resident),
                pl.BlockSpec((1, NO), resident),
            ],
            out_specs=pl.BlockSpec((tb, NO), tiles),
            compiler_params=pltpu.CompilerParams(
                dimension_semantics=("parallel",),        # megacore / v7x 2-TC sharding
            ),
            cost_estimate=cost,
        )(x, wb, bb, wh, bh)
        fused = fused[:B]

    mu = fused[:, :A]
    var = fused[:, A:2 * A]
    val = fused[:, 2 * A:]
    return mu, var, val


def init_a2c_ca_params(key, input_size, action_size, hidden=32):
    """Mirror nn.Linear default init: U(-1/sqrt(fan_in), 1/sqrt(fan_in))."""
    ks = jax.random.split(key, 8)
    b_in = 1.0 / jnp.sqrt(jnp.float32(input_size))
    b_h = 1.0 / jnp.sqrt(jnp.float32(hidden))
    wb = jax.random.uniform(ks[0], (input_size, hidden), jnp.float32, -b_in, b_in)
    bb = jax.random.uniform(ks[1], (1, hidden), jnp.float32, -b_in, b_in)
    wmu = jax.random.uniform(ks[2], (hidden, action_size), jnp.float32, -b_h, b_h)
    bmu = jax.random.uniform(ks[3], (1, action_size), jnp.float32, -b_h, b_h)
    wvar = jax.random.uniform(ks[4], (hidden, action_size), jnp.float32, -b_h, b_h)
    bvar = jax.random.uniform(ks[5], (1, action_size), jnp.float32, -b_h, b_h)
    wv = jax.random.uniform(ks[6], (hidden, 1), jnp.float32, -b_h, b_h)
    bv = jax.random.uniform(ks[7], (1, 1), jnp.float32, -b_h, b_h)
    return wb, bb, wmu, bmu, wvar, bvar, wv, bv


def a2c_net_ca_reference(x, wb, bb, wmu, bmu, wvar, bvar, wv, bv):
    """Pure-JAX reference of the PyTorch forward pass."""
    h = jnp.maximum(x @ wb + bb, 0.0)
    return jnp.tanh(h @ wmu + bmu), jax.nn.softplus(h @ wvar + bvar), h @ wv + bv


if __name__ == "__main__":
    key = jax.random.PRNGKey(0)
    kx, kp, kx2 = jax.random.split(key, 3)

    input_size, action_size = 24, 4
    params = init_a2c_ca_params(kp, input_size, action_size)

    # Small batch -> single-block (grid-less) path.
    batch = 8
    x = jax.random.normal(kx, (batch, input_size), jnp.float32)
    mu, var, val = jax.block_until_ready(a2c_net_ca_forward(x, *params))
    mu_r, var_r, val_r = a2c_net_ca_reference(x, *params)
    assert mu.shape == (batch, action_size) and var.shape == (batch, action_size)
    assert val.shape == (batch, 1)
    assert jnp.allclose(mu, mu_r, atol=1e-5, rtol=1e-5), "mu mismatch"
    assert jnp.allclose(var, var_r, atol=1e-5, rtol=1e-5), "var mismatch"
    assert jnp.allclose(val, val_r, atol=1e-5, rtol=1e-5), "value mismatch"

    # Larger ragged batch -> batch-tiled grid path (>=2 even tiles, resident weights).
    batch2 = 40
    x2 = jax.random.normal(kx2, (batch2, input_size), jnp.float32)
    mu2, var2, val2 = jax.block_until_ready(
        a2c_net_ca_forward(x2, *params, block_batch=16))
    mu2_r, var2_r, val2_r = a2c_net_ca_reference(x2, *params)
    assert mu2.shape == (batch2, action_size) and val2.shape == (batch2, 1)
    assert jnp.allclose(mu2, mu2_r, atol=1e-5, rtol=1e-5), "mu mismatch (tiled)"
    assert jnp.allclose(var2, var2_r, atol=1e-5, rtol=1e-5), "var mismatch (tiled)"
    assert jnp.allclose(val2, val2_r, atol=1e-5, rtol=1e-5), "value mismatch (tiled)"

    print("KERNEL_OK")
</pallas_src>

<mosaic_0001>
module attributes {stable_mosaic.version = 11 : i64} {
  func.func @_a2c_ca_kernel(%arg0: memref<8x24xf32, #tpu.memory_space<vmem>>, %arg1: memref<24x32xf32, #tpu.memory_space<vmem>>, %arg2: memref<1x32xf32, #tpu.memory_space<vmem>>, %arg3: memref<32x9xf32, #tpu.memory_space<vmem>>, %arg4: memref<1x9xf32, #tpu.memory_space<vmem>>, %arg5: memref<8x9xf32, #tpu.memory_space<vmem>>) attributes {dimension_semantics = [], scalar_prefetch = 0 : i64, scratch_operands = 0 : i64, tpu.core_type = #tpu.core_type<tc>} {
    %c0 = arith.constant 0 : index
    %c0_0 = arith.constant 0 : index
    %0 = vector.load %arg0[%c0, %c0_0] : memref<8x24xf32, #tpu.memory_space<vmem>>, vector<8x24xf32>
    %c0_1 = arith.constant 0 : index
    %c0_2 = arith.constant 0 : index
    %1 = vector.load %arg1[%c0_1, %c0_2] : memref<24x32xf32, #tpu.memory_space<vmem>>, vector<24x32xf32>
    %cst = arith.constant dense<0.000000e+00> : vector<8x32xf32>
    %2 = tpu.matmul %0, %1, %cst {dimension_numbers = #tpu.dot_dimension_numbers<[1], [0], [0], [1], [0, 0, 1, 1], [], []>} : vector<8x24xf32>, vector<24x32xf32>, vector<8x32xf32> -> vector<8x32xf32>
    %c0_3 = arith.constant 0 : index
    %c0_4 = arith.constant 0 : index
    %3 = vector.load %arg2[%c0_3, %c0_4] : memref<1x32xf32, #tpu.memory_space<vmem>>, vector<1x32xf32>
    %4 = vector.broadcast %3 : vector<1x32xf32> to vector<8x32xf32>
    %5 = arith.addf %2, %4 : vector<8x32xf32>
    %cst_5 = arith.constant 0.000000e+00 : f32
    %6 = vector.broadcast %cst_5 : f32 to vector<8x32xf32>
    %7 = arith.maximumf %5, %6 : vector<8x32xf32>
    %c0_6 = arith.constant 0 : index
    %c0_7 = arith.constant 0 : index
    %8 = vector.load %arg3[%c0_6, %c0_7] : memref<32x9xf32, #tpu.memory_space<vmem>>, vector<32x9xf32>
    %cst_8 = arith.constant dense<0.000000e+00> : vector<8x9xf32>
    %9 = tpu.matmul %7, %8, %cst_8 {dimension_numbers = #tpu.dot_dimension_numbers<[1], [0], [0], [1], [0, 0, 1, 1], [], []>} : vector<8x32xf32>, vector<32x9xf32>, vector<8x9xf32> -> vector<8x9xf32>
    %c0_9 = arith.constant 0 : index
    %c0_10 = arith.constant 0 : index
    %10 = vector.load %arg4[%c0_9, %c0_10] : memref<1x9xf32, #tpu.memory_space<vmem>>, vector<1x9xf32>
    %11 = vector.broadcast %10 : vector<1x9xf32> to vector<8x9xf32>
    %12 = arith.addf %9, %11 : vector<8x9xf32>
    %13 = tpu.iota {dimensions = array<i32: 1>} : vector<8x9xi32>
    %14 = math.tanh %12 : vector<8x9xf32>
    %cst_11 = arith.constant 0.000000e+00 : f32
    %15 = vector.broadcast %cst_11 : f32 to vector<8x9xf32>
    %16 = arith.maximumf %12, %15 : vector<8x9xf32>
    %17 = math.absf %12 : vector<8x9xf32>
    %cst_12 = arith.constant 0.000000e+00 : f32
    %18 = vector.broadcast %cst_12 : f32 to vector<8x9xf32>
    %19 = arith.subf %18, %17 : vector<8x9xf32>
    %20 = math.exp %19 : vector<8x9xf32>
    %21 = math.log1p %20 : vector<8x9xf32>
    %22 = arith.addf %16, %21 : vector<8x9xf32>
    %c4_i32 = arith.constant 4 : i32
    %23 = vector.broadcast %c4_i32 : i32 to vector<8x9xi32>
    %24 = arith.cmpi slt, %13, %23 : vector<8x9xi32>
    %c8_i32 = arith.constant 8 : i32
    %25 = vector.broadcast %c8_i32 : i32 to vector<8x9xi32>
    %26 = arith.cmpi slt, %13, %25 : vector<8x9xi32>
    %27 = arith.select %26, %22, %12 : vector<8x9xi1>, vector<8x9xf32>
    %28 = arith.select %24, %14, %27 : vector<8x9xi1>, vector<8x9xf32>
    %c0_13 = arith.constant 0 : index
    %c0_14 = arith.constant 0 : index
    %29 = vector.load %arg5[%c0_13, %c0_14] : memref<8x9xf32, #tpu.memory_space<vmem>>, vector<8x9xf32>
    tpu.vector_store %arg5[%c0_13, %c0_14], %28 {strides = array<i32>} : memref<8x9xf32, #tpu.memory_space<vmem>>, vector<8x9xf32>,
    return
  }
}

</mosaic_0001>

<llo_original>
// kernel: a2c_net_ca_forward.1
$region0: #{a2c_net_ca_forward.1}
  #allocation0 [shape = 'u32[]', space=smem, size = 0x4, offset = 0x4, fixed_abs, tag = 'smem constant byte address 0x4 - core index']
  #allocation1 [shape = 'u32[144,128]{1,0:T(1,128)}', space=vmem, size = 0x12000, scoped, tag = 'internal scratch']
  %s0 = inlined_call_operand.vmem [shape: f32[8,24], index: 0, kind: input, shape index: {}]
  %s1 = inlined_call_operand.vmem [shape: f32[24,32], index: 1, kind: input, shape index: {}]
  %s2 = inlined_call_operand.vmem [shape: f32[1,32], index: 2, kind: input, shape index: {}]
  %s3 = inlined_call_operand.vmem [shape: f32[32,9], index: 3, kind: input, shape index: {}]
  %s4 = inlined_call_operand.vmem [shape: f32[1,9], index: 4, kind: input, shape index: {}]
  %s5 = inlined_call_operand.vmem [shape: f32[8,9], index: 5, kind: output, shape index: {}]
  %s6 = sld [smem:[#allocation0]]
  $region30: #{a2c_net_ca_forward.1} parent=0
    _
  %s8 = ssub.s32 1, %s6
  %s9 = scalar_select 0, %s8, %s6
  // Predicated region
  $region2: #{a2c_net_ca_forward.1} parent=0 // pred_check
    _
  $region3: #{a2c_net_ca_forward.1} parent=0 // pred_check_branch
    %11 = sbr.rel (0) target = $region5
  $region4: #{a2c_net_ca_forward.1} parent=0 // pred_region
    _
  $region5: #{a2c_net_ca_forward.1} parent=0 // pred_fallthru
    _
  // Predicated region
  $region6: #{a2c_net_ca_forward.1} parent=0 // pred_check
    _
  $region7: #{a2c_net_ca_forward.1} parent=0 // pred_check_branch
    %13 = sbr.rel (0) target = $region9
  $region8: #{a2c_net_ca_forward.1} parent=0 // pred_region
    _
  $region9: #{a2c_net_ca_forward.1} parent=0 // pred_fallthru
    _
  // Predicated region
  $region10: #{a2c_net_ca_forward.1} parent=0 // pred_check
    _
  $region11: #{a2c_net_ca_forward.1} parent=0 // pred_check_branch
    %15 = sbr.rel (0) target = $region13
  $region12: #{a2c_net_ca_forward.1} parent=0 // pred_region
    _
  $region13: #{a2c_net_ca_forward.1} parent=0 // pred_fallthru
    _
  // Predicated region
  $region14: #{a2c_net_ca_forward.1} parent=0 // pred_check
    _
  $region15: #{a2c_net_ca_forward.1} parent=0 // pred_check_branch
    %17 = sbr.rel (0) target = $region17
  $region16: #{a2c_net_ca_forward.1} parent=0 // pred_region
    _
  $region17: #{a2c_net_ca_forward.1} parent=0 // pred_fallthru
    _
  // Predicated region
  $region18: #{a2c_net_ca_forward.1} parent=0 // pred_check
    _
  $region19: #{a2c_net_ca_forward.1} parent=0 // pred_check_branch
    %19 = sbr.rel (0) target = $region21
  $region20: #{a2c_net_ca_forward.1} parent=0 // pred_region
    _
  $region21: #{a2c_net_ca_forward.1} parent=0 // pred_fallthru
    _
  %v20 = vld [vmem:[%s0] sm:$0xff]
  %v21 = vld [vmem:[%s1] sm:$0xff]
  %v22 = vld [vmem:[%s1 + $0x8] sm:$0xff]
  %v23 = vld [vmem:[%s1 + $0x10] sm:$0xff]
  %v24 = vld [vmem:[%s2] sm:$0x1]
  %v26 = vlaneseq
  %v27 = vshrl.u32 %v26, 7
  %v28 = vsub.s32 0, %v27
  %v29 = vrot.slane %v24, %v28
  %vm31 = vcmask 195584
  %v33 = vsel %vm31, %v20, 0
  %35 = vmatprep.subr.mxu0 0.0
  %36 = vmatpush1.msra.mxu0 %v21
  %37 = vmatprep.subr.mxu0 0.0
  %38 = vmatpush1.msra.mxu0 %v22
  %39 = vmatprep.subr.mxu0 0.0
  %40 = vmatpush1.msra.mxu0 %v23
  %41 = vmatprep.subr.mxu0 0.0
  %42 = vmatpush1.msra.mxu0 0.0
  %43 = vmatprep.subr.mxu0 0.0
  %44 = vmatpush1.msra.mxu0 0.0
  %45 = vmatprep.subr.mxu0 0.0
  %46 = vmatpush1.msra.mxu0 0.0
  %47 = vmatprep.subr.mxu0 0.0
  %48 = vmatpush1.msra.mxu0 0.0
  %49 = vmatprep.subr.mxu0 0.0
  %50 = vmatpush1.msra.mxu0 0.0
  %51 = vmatprep.subr.mxu0 0.0
  %52 = vmatpush1.msra.mxu0 0.0
  %53 = vmatprep.subr.mxu0 0.0
  %54 = vmatpush1.msra.mxu0 0.0
  %55 = vmatprep.subr.mxu0 0.0
  %56 = vmatpush1.msra.mxu0 0.0
  %57 = vmatprep.subr.mxu0 0.0
  %58 = vmatpush1.msra.mxu0 0.0
  %59 = vmatprep.subr.mxu0 0.0
  %60 = vmatpush1.msra.mxu0 0.0
  %61 = vmatprep.subr.mxu0 0.0
  %62 = vmatpush1.msra.mxu0 0.0
  %63 = vmatprep.subr.mxu0 0.0
  %64 = vmatpush1.msra.mxu0 0.0
  %65 = vmatprep.subr.mxu0 0.0
  %66 = vmatpush1.msra.mxu0 0.0
  %67 = vmatprep.subr.mxu0 0.0
  %68 = vmatpush1.msra.mxu0 0.0
  %69 = vmatprep.subr.mxu0 0.0
  %70 = vmatpush1.msra.mxu0 0.0
  %71 = vmatprep.subr.mxu0 0.0
  %72 = vmatpush1.msra.mxu0 0.0
  %73 = vmatprep.subr.mxu0 0.0
  %74 = vmatpush1.msra.mxu0 0.0
  %75 = vmatprep.subr.mxu0 0.0
  %76 = vmatpush1.msra.mxu0 0.0
  %77 = vmatprep.subr.mxu0 0.0
  %78 = vmatpush1.msra.mxu0 0.0
  %79 = vmatprep.subr.mxu0 0.0
  %80 = vmatpush1.msra.mxu0 0.0
  %81 = vmatprep.subr.mxu0 0.0
  %82 = vmatpush1.msra.mxu0 0.0
  %83 = vmatprep.subr.mxu0 0.0
  %84 = vmatpush1.msra.mxu0 0.0
  %85 = vmatprep.subr.mxu0 0.0
  %86 = vmatpush1.msra.mxu0 0.0
  %87 = vmatprep.subr.mxu0 0.0
  %88 = vmatpush1.msra.mxu0 0.0
  %89 = vmatprep.subr.mxu0 0.0
  %90 = vmatpush1.msra.mxu0 0.0
  %91 = vmatprep.subr.mxu0 0.0
  %92 = vmatpush1.msra.mxu0 0.0
  %93 = vmatprep.subr.mxu0 0.0
  %94 = vmatpush1.msra.mxu0 0.0
  %95 = vmatprep.subr.mxu0 0.0
  %96 = vmatpush1.msra.mxu0 0.0
  %97 = vmatprep.subr.mxu0 0.0
  %98 = vmatpush1.msra.mxu0 0.0
  %99 = vmatprep.mubr.f32.mxu0 0.0
  %100 = vmatmul.mubr.f32.gmra.mrb[0].mxu0 %v33
  %v101 = vpop.f32.mrb[0].mxu0
  %v102 = vadd.f32 %v29, %v101
  %v103 = vpop.f32.mrb[0].mxu0
  %104 = vdwg.mxu0
  %v105 = vmax.f32 %v102, 0.0
  %v106 = vld [vmem:[%s3] sm:$0xff]
  %v107 = vld [vmem:[%s3 + $0x8] sm:$0xff]
  %v108 = vld [vmem:[%s3 + $0x10] sm:$0xff]
  %v109 = vld [vmem:[%s3 + $0x18] sm:$0xff]
  %v110 = vld [vmem:[%s4] sm:$0x1]
  %v112 = vlaneseq
  %v113 = vshrl.u32 %v112, 7
  %v114 = vsub.s32 0, %v113
  %v115 = vrot.slane %v110, %v114
  %vm117 = vcmask 261120
  %v119 = vsel %vm117, %v105, 0
  %121 = vmatprep.subr.mxu0 0.0
  %122 = vmatpush1.msra.mxu0 %v106
  %123 = vmatprep.subr.mxu0 0.0
  %124 = vmatpush1.msra.mxu0 %v107
  %125 = vmatprep.subr.mxu0 0.0
  %126 = vmatpush1.msra.mxu0 %v108
  %127 = vmatprep.subr.mxu0 0.0
  %128 = vmatpush1.msra.mxu0 %v109
  %129 = vmatprep.subr.mxu0 0.0
  %130 = vmatpush1.msra.mxu0 0.0
  %131 = vmatprep.subr.mxu0 0.0
  %132 = vmatpush1.msra.mxu0 0.0
  %133 = vmatprep.subr.mxu0 0.0
  %134 = vmatpush1.msra.mxu0 0.0
  %135 = vmatprep.subr.mxu0 0.0
  %136 = vmatpush1.msra.mxu0 0.0
  %137 = vmatprep.subr.mxu0 0.0
  %138 = vmatpush1.msra.mxu0 0.0
  %139 = vmatprep.subr.mxu0 0.0
  %140 = vmatpush1.msra.mxu0 0.0
  %141 = vmatprep.subr.mxu0 0.0
  %142 = vmatpush1.msra.mxu0 0.0
  %143 = vmatprep.subr.mxu0 0.0
  %144 = vmatpush1.msra.mxu0 0.0
  %145 = vmatprep.subr.mxu0 0.0
  %146 = vmatpush1.msra.mxu0 0.0
  %147 = vmatprep.subr.mxu0 0.0
  %148 = vmatpush1.msra.mxu0 0.0
  %149 = vmatprep.subr.mxu0 0.0
  %150 = vmatpush1.msra.mxu0 0.0
  %151 = vmatprep.subr.mxu0 0.0
  %152 = vmatpush1.msra.mxu0 0.0
  %153 = vmatprep.subr.mxu0 0.0
  %154 = vmatpush1.msra.mxu0 0.0
  %155 = vmatprep.subr.mxu0 0.0
  %156 = vmatpush1.msra.mxu0 0.0
  %157 = vmatprep.subr.mxu0 0.0
  %158 = vmatpush1.msra.mxu0 0.0
  %159 = vmatprep.subr.mxu0 0.0
  %160 = vmatpush1.msra.mxu0 0.0
  %161 = vmatprep.subr.mxu0 0.0
  %162 = vmatpush1.msra.mxu0 0.0
  %163 = vmatprep.subr.mxu0 0.0
  %164 = vmatpush1.msra.mxu0 0.0
  %165 = vmatprep.subr.mxu0 0.0
  %166 = vmatpush1.msra.mxu0 0.0
  %167 = vmatprep.subr.mxu0 0.0
  %168 = vmatpush1.msra.mxu0 0.0
  %169 = vmatprep.subr.mxu0 0.0
  %170 = vmatpush1.msra.mxu0 0.0
  %171 = vmatprep.subr.mxu0 0.0
  %172 = vmatpush1.msra.mxu0 0.0
  %173 = vmatprep.subr.mxu0 0.0
  %174 = vmatpush1.msra.mxu0 0.0
  %175 = vmatprep.subr.mxu0 0.0
  %176 = vmatpush1.msra.mxu0 0.0
  %177 = vmatprep.subr.mxu0 0.0
  %178 = vmatpush1.msra.mxu0 0.0
  %179 = vmatprep.subr.mxu0 0.0
  %180 = vmatpush1.msra.mxu0 0.0
  %181 = vmatprep.subr.mxu0 0.0
  %182 = vmatpush1.msra.mxu0 0.0
  %183 = vmatprep.subr.mxu0 0.0
  %184 = vmatpush1.msra.mxu0 0.0
  %185 = vmatprep.mubr.f32.mxu0 0.0
  %186 = vmatmul.mubr.f32.gmra.mrb[0].mxu0 %v119
  %v187 = vpop.f32.mrb[0].mxu0
  %v188 = vadd.f32 %v115, %v187
  %v189 = vpop.f32.mrb[0].mxu0
  %190 = vdwg.mxu0
  %v191 = vlaneseq
  %v192 = vand.u32 %v191, 127
  %v193 = vtanh.pop %v188
  %v194 = vmax.f32 %v188, 0.0
  %v195 = vand.u32 2147483647, %v188
  %v196 = vsub.f32 0.0, %v195
  %v197 = vmul.f32 %v196, 1.442695
  %v198 = vpow.pop %v197
  %v199 = vadd.f32 %v198, 1.0
  %v200 = vlog2.pop %v199
  %v201 = vmul.f32 %v200, 0.6931472
  %v202 = vmul.f32 -0.5, %v198
  %v203 = vadd.f32 %v202, 1.0
  %v204 = vmul.f32 %v203, %v198
  %v205 = vand.u32 2147483647, %v198
  %vm206 = vcmp.lt.f32.partialorder %v205, 0.0004427343
  %v207 = vsel %vm206, %v204, %v201
  %v208 = vadd.f32 %v194, %v207
  %vm209 = vcmp.lt.s32.totalorder %v192, 4
  %vm210 = vcmp.lt.s32.totalorder %v192, 8
  %v211 = vsel %vm210, %v208, %v188
  %v212 = vsel %vm209, %v193, %v211
  %vm213 = vcmask 72704
  %214 = vst.msk [vmem:[%s5] sm:$0xff] %vm213, %v212
  // Predicated region
  $region22: #{a2c_net_ca_forward.1} parent=0 // pred_check
    _
  $region23: #{a2c_net_ca_forward.1} parent=0 // pred_check_branch
    %216 = sbr.rel (0) target = $region25
  $region24: #{a2c_net_ca_forward.1} parent=0 // pred_region
    _
  $region25: #{a2c_net_ca_forward.1} parent=0 // pred_fallthru
    _
  // Predicated region
  $region26: #{a2c_net_ca_forward.1} parent=0 // pred_check
    _
  $region27: #{a2c_net_ca_forward.1} parent=0 // pred_check_branch
    %218 = sbr.rel (0) target = $region29
  $region28: #{a2c_net_ca_forward.1} parent=0 // pred_region
    _
  $region29: #{a2c_net_ca_forward.1} parent=0 // pred_fallthru
    _

</llo_original>
